<compile_context>
chip_gen: v7x
topology: tpu7x:2x2x1
jax: 0.10.0
libtpu: 0.0.40
codegen_flags: <defaults>
</compile_context>

<pallas_src>
import functools

import jax
import jax.numpy as jnp
from jax import lax
from jax.experimental import pallas as pl
from jax.experimental.pallas import tpu as pltpu

_K = 4     # torch.topk(..., 4, ...) -- literal 4 in the reference module
_SUB = 8   # sublane rows per data tile / candidate tile (f32 vreg height)


def _bootstrap_l2_kernel(x_ref, t_ref, o_ref, cand_ref, *,
                         sub, num_chunks, full_tiles, last_full, last_tail):
    """One (batch b, chunk c) grid step.

    x_ref / t_ref: (row_chunk, 128) blocks of the lane-folded flattened input.
    o_ref:         (1, 1, 1) per-batch partial result.
    cand_ref:      (K, 8, 128) running top-4 (only used when num_chunks > 1).
    """
    c = pl.program_id(1)

    def load_sq(row0):
        # Squared difference for one (sub, 128) tile; math always in f32
        # regardless of the (possibly narrow) input dtype.
        x = x_ref[pl.ds(row0, sub), :].astype(jnp.float32)
        t = t_ref[pl.ds(row0, sub), :].astype(jnp.float32)
        d = x - t
        return d * d

    def fold_tile(carry, v):
        # Compare-swap network: insert tile `v` into the running top-4.
        # Preserves the multiset {carry} U {v}; discards per-slot minimum.
        c0, c1, c2, c3 = carry
        n0 = jnp.maximum(c0, v)
        v = jnp.minimum(c0, v)
        n1 = jnp.maximum(c1, v)
        v = jnp.minimum(c1, v)
        n2 = jnp.maximum(c2, v)
        v = jnp.minimum(c2, v)
        n3 = jnp.maximum(c3, v)
        return (n0, n1, n2, n3)

    def fold_tiles(carry, n_tiles):
        if n_tiles <= 0:
            return carry
        if n_tiles == 1:
            return fold_tile(carry, load_sq(0))

        def body(i, carry):
            r = pl.multiple_of(i * sub, sub)
            return fold_tile(carry, load_sq(r))

        unroll = n_tiles if n_tiles <= 8 else 8
        return lax.fori_loop(0, n_tiles, body, carry, unroll=unroll)

    if num_chunks > 1:
        @pl.when(c == 0)
        def _init():
            cand_ref[...] = jnp.zeros_like(cand_ref)

        @pl.when(c < num_chunks - 1)
        def _full_chunk():
            cand = (cand_ref[0], cand_ref[1], cand_ref[2], cand_ref[3])
            n0, n1, n2, n3 = fold_tiles(cand, full_tiles)
            cand_ref[0] = n0
            cand_ref[1] = n1
            cand_ref[2] = n2
            cand_ref[3] = n3

    @pl.when(c == num_chunks - 1)
    def _last_chunk_and_finalize():
        if num_chunks > 1:
            cand = (cand_ref[0], cand_ref[1], cand_ref[2], cand_ref[3])
        else:
            zero = jnp.zeros((sub, 128), jnp.float32)
            cand = (zero, zero, zero, zero)

        cand = fold_tiles(cand, last_full)
        if last_tail:
            # Only this single straddling tile is masked: rows >= last_tail
            # are DMA over-read garbage -> select 0 (valid since squares >= 0
            # and the mask select also neutralizes potential NaN garbage).
            sq = load_sq(last_full * sub)
            row_idx = lax.broadcasted_iota(jnp.int32, (sub, 128), 0)
            sq = jnp.where(row_idx < last_tail, sq, jnp.float32(0.0))
            cand = fold_tile(cand, sq)

        # Exact top-4 sum over the tiny (K, sub, 128) candidate multiset:
        # 4 branchless (masked max + duplicate count) passes.  Ties are
        # handled by counting; extra zero candidates only matter when the
        # true 4th value is 0 and then contribute 0 anyway.
        acc = jnp.float32(0.0)
        remaining = jnp.float32(_K)
        bound = jnp.float32(0.0)
        for i in range(_K):
            if i == 0:
                cur = cand
            else:
                cur = tuple(jnp.where(v < bound, v, jnp.float32(-1.0))
                            for v in cand)
            v_top = cur[0].max()
            for v in cur[1:]:
                v_top = jnp.maximum(v_top, v.max())
            cnt = jnp.float32(0.0)
            for v in cand:
                cnt = cnt + jnp.sum(
                    jnp.where(v == v_top, jnp.float32(1.0), jnp.float32(0.0)))
            take = jnp.minimum(cnt, remaining)
            acc = acc + take * v_top
            remaining = remaining - take
            bound = v_top
        o_ref[...] = jnp.broadcast_to(acc, o_ref.shape)


def _round_up(x, m):
    return -(-x // m) * m


def bootstrapped_pix_l2(input_v, target, bootstrap_factor=4, max_chunk_rows=2048):
    """Pallas implementation of BootstrapedPixL2.forward (returns f32 scalar).

    Pass inputs in their native dtype (f32 / bf16); the kernel upcasts per
    tile, so callers should NOT pre-upcast to f32 (the kernel is HBM-bound).
    """
    del bootstrap_factor  # the reference forward hardcodes k=4
    if input_v.shape != target.shape:
        raise ValueError("input and target must have the same shape")
    B = input_v.shape[0]
    x = input_v.reshape(B, -1)
    t = target.reshape(B, -1)
    N = x.shape[1]
    if N < _K:
        raise ValueError(
            f"BootstrapedPixL2 needs at least {_K} elements per row, got {N}")

    pad = (-N) % 128
    if pad:
        # TODO(synk): handle N % 128 != 0 in-kernel with a lane mask instead of
        # this HBM pad copy (costs ~1 extra read+write of both tensors).
        x = jnp.pad(x, ((0, 0), (0, pad)))
        t = jnp.pad(t, ((0, 0), (0, pad)))
    rows = (N + pad) // 128
    x = x.reshape(B, rows, 128)
    t = t.reshape(B, rows, 128)

    # ---- chunking ---------------------------------------------------------
    max_chunk_rows = max(_SUB, (max_chunk_rows // _SUB) * _SUB)
    if rows <= max_chunk_rows and (rows <= _SUB or rows % _SUB == 0):
        num_chunks, row_chunk = 1, rows           # full-extent block, no mask
    else:
        # Multi-chunk: block rows must be a multiple of 8 (sublane tile).
        # Balance the chunks so the last one is as full as possible.
        num_chunks = max(pl.cdiv(rows, max_chunk_rows), 2 if rows % _SUB else 1)
        row_chunk = _round_up(pl.cdiv(rows, num_chunks), _SUB)
    sub = min(rows, _SUB)
    last_rows = rows - (num_chunks - 1) * row_chunk
    full_tiles = row_chunk // sub      # tiles per non-last chunk
    last_full = last_rows // sub       # unmasked tiles in the last chunk
    last_tail = last_rows % sub        # valid rows in the single masked tile

    kernel = functools.partial(
        _bootstrap_l2_kernel, sub=sub, num_chunks=num_chunks,
        full_tiles=full_tiles, last_full=last_full, last_tail=last_tail)

    # TODO(synk): for B == 1 on v7x (2 TensorCores), also split the chunk axis
    # into a second "parallel" grid dim with per-split top-4 outputs merged in
    # the wrapper, so both cores get work.
    out = pl.pallas_call(
        kernel,
        out_shape=jax.ShapeDtypeStruct((B, 1, 1), jnp.float32),
        grid=(B, num_chunks),
        in_specs=[
            pl.BlockSpec((None, row_chunk, 128), lambda b, c: (b, c, 0)),
            pl.BlockSpec((None, row_chunk, 128), lambda b, c: (b, c, 0)),
        ],
        out_specs=pl.BlockSpec((1, 1, 1), lambda b, c: (b, 0, 0)),
        scratch_shapes=[pltpu.VMEM((_K, _SUB, 128), jnp.float32)],
        compiler_params=pltpu.CompilerParams(
            dimension_semantics=("parallel", "arbitrary")),
    )(x, t)
    return jnp.sum(out)


def _reference(input_v, target):
    B = input_v.shape[0]
    sq = jnp.square(input_v.astype(jnp.float32) - target.astype(jnp.float32))
    sq = sq.reshape(B, -1)
    top, _ = jax.lax.top_k(sq, _K)
    return jnp.sum(top)


def _check(name, got, want, rtol=1e-5, atol=1e-5):
    got = jax.block_until_ready(got)
    want = jax.block_until_ready(want)
    assert jnp.allclose(got, want, rtol=rtol, atol=atol), (name, got, want)


if __name__ == "__main__":
    key = jax.random.PRNGKey(0)
    k1, k2, k3, k4, k5, k6 = jax.random.split(key, 6)

    # Main case (typical NCHW input for the PyTorch module):
    # rows = 4*16*16/128 = 8 -> single chunk, register-resident candidates.
    B, C, H, W = 2, 4, 16, 16
    x1 = jax.random.normal(k1, (B, C, H, W), dtype=jnp.float32)
    t1 = jax.random.normal(k2, (B, C, H, W), dtype=jnp.float32)
    _check("single_chunk", bootstrapped_pix_l2(x1, t1), _reference(x1, t1))

    # rows = 6*256/128 = 12 -> forced 2 chunks of 8 rows; exercises the VMEM
    # candidate carry and the single masked straddling tile (4 valid rows).
    x2 = jax.random.normal(k3, (B, 6, H, W), dtype=jnp.float32)
    t2 = jax.random.normal(k4, (B, 6, H, W), dtype=jnp.float32)
    _check("ragged_chunks", bootstrapped_pix_l2(x2, t2), _reference(x2, t2))

    # rows = 16*256/128 = 32 with max_chunk_rows=16 -> 2 chunks x 2 tiles;
    # exercises the unrolled fori_loop in both chunk branches.
    x3 = jax.random.normal(k5, (B, 16, H, W), dtype=jnp.float32)
    t3 = jax.random.normal(k6, (B, 16, H, W), dtype=jnp.float32)
    _check("multi_tile",
           bootstrapped_pix_l2(x3, t3, max_chunk_rows=16), _reference(x3, t3))

    # Native narrow dtype path (bf16 in HBM, f32 math inside the kernel).
    xb = x1.astype(jnp.bfloat16)
    tb = t1.astype(jnp.bfloat16)
    _check("bf16", bootstrapped_pix_l2(xb, tb), _reference(xb, tb))

    print("KERNEL_OK")
</pallas_src>

<mosaic_0001>
module attributes {stable_mosaic.version = 11 : i64} {
  func.func @_bootstrap_l2_kernel(%arg0: i32, %arg1: i32, %arg2: memref<1x8x128xf32, #tpu.memory_space<vmem>>, %arg3: memref<1x8x128xf32, #tpu.memory_space<vmem>>, %arg4: memref<1x1x1xf32, #tpu.memory_space<vmem>>, %arg5: memref<4x8x128xf32, #tpu.memory_space<vmem>>) attributes {dimension_semantics = [#tpu.dimension_semantics<parallel>, #tpu.dimension_semantics<arbitrary>], iteration_bounds = array<i64: 2, 1>, scalar_prefetch = 0 : i64, scratch_operands = 1 : i64, tpu.core_type = #tpu.core_type<tc>, window_params = [{transform_indices = @transform_0, window_bounds = array<i64: 1, 8, 128>}, {transform_indices = @transform_1, window_bounds = array<i64: 1, 8, 128>}, {transform_indices = @transform_2, window_bounds = array<i64: 1, 1, 1>}]} {
    %c0_i32 = arith.constant 0 : i32
    %0 = arith.cmpi eq, %arg1, %c0_i32 : i32
    %1 = arith.extui %0 : i1 to i32
    %c0_i32_0 = arith.constant 0 : i32
    %2 = arith.cmpi ne, %1, %c0_i32_0 : i32
    scf.if %2 {
      %cst = arith.constant 0.000000e+00 : f32
      %3 = vector.broadcast %cst : f32 to vector<8x128xf32>
      %c0 = arith.constant 0 : index
      %c0_1 = arith.constant 0 : index
      %c0_2 = arith.constant 0 : index
      %4 = vector.load %arg2[%c0, %c0_1, %c0_2] : memref<1x8x128xf32, #tpu.memory_space<vmem>>, vector<1x8x128xf32>
      %5 = vector.shape_cast %4 : vector<1x8x128xf32> to vector<8x128xf32>
      %c0_3 = arith.constant 0 : index
      %c0_4 = arith.constant 0 : index
      %c0_5 = arith.constant 0 : index
      %6 = vector.load %arg3[%c0_3, %c0_4, %c0_5] : memref<1x8x128xf32, #tpu.memory_space<vmem>>, vector<1x8x128xf32>
      %7 = vector.shape_cast %6 : vector<1x8x128xf32> to vector<8x128xf32>
      %8 = arith.subf %5, %7 : vector<8x128xf32>
      %9 = arith.mulf %8, %8 : vector<8x128xf32>
      %10 = arith.maximumf %3, %9 : vector<8x128xf32>
      %11 = arith.minimumf %3, %9 : vector<8x128xf32>
      %12 = arith.maximumf %3, %11 : vector<8x128xf32>
      %13 = arith.minimumf %3, %11 : vector<8x128xf32>
      %14 = arith.maximumf %3, %13 : vector<8x128xf32>
      %15 = arith.minimumf %3, %13 : vector<8x128xf32>
      %16 = arith.maximumf %3, %15 : vector<8x128xf32>
      %17 = vector.shape_cast %10 : vector<8x128xf32> to vector<1x8x128xf32>
      %cst_6 = arith.constant dense<0xFF800000> : vector<1xf32>
      %18 = vector.multi_reduction <maximumf>, %17, %cst_6 [1, 2] : vector<1x8x128xf32> to vector<1xf32>
      %19 = vector.shape_cast %18 : vector<1xf32> to vector<1x1x1xf32>
      %20 = vector.extract %19[0, 0, 0] : f32 from vector<1x1x1xf32>
      %21 = vector.shape_cast %12 : vector<8x128xf32> to vector<1x8x128xf32>
      %cst_7 = arith.constant dense<0xFF800000> : vector<1xf32>
      %22 = vector.multi_reduction <maximumf>, %21, %cst_7 [1, 2] : vector<1x8x128xf32> to vector<1xf32>
      %23 = vector.shape_cast %22 : vector<1xf32> to vector<1x1x1xf32>
      %24 = vector.extract %23[0, 0, 0] : f32 from vector<1x1x1xf32>
      %25 = arith.maximumf %20, %24 : f32
      %26 = vector.shape_cast %14 : vector<8x128xf32> to vector<1x8x128xf32>
      %cst_8 = arith.constant dense<0xFF800000> : vector<1xf32>
      %27 = vector.multi_reduction <maximumf>, %26, %cst_8 [1, 2] : vector<1x8x128xf32> to vector<1xf32>
      %28 = vector.shape_cast %27 : vector<1xf32> to vector<1x1x1xf32>
      %29 = vector.extract %28[0, 0, 0] : f32 from vector<1x1x1xf32>
      %30 = arith.maximumf %25, %29 : f32
      %31 = vector.shape_cast %16 : vector<8x128xf32> to vector<1x8x128xf32>
      %cst_9 = arith.constant dense<0xFF800000> : vector<1xf32>
      %32 = vector.multi_reduction <maximumf>, %31, %cst_9 [1, 2] : vector<1x8x128xf32> to vector<1xf32>
      %33 = vector.shape_cast %32 : vector<1xf32> to vector<1x1x1xf32>
      %34 = vector.extract %33[0, 0, 0] : f32 from vector<1x1x1xf32>
      %35 = arith.maximumf %30, %34 : f32
      %36 = vector.broadcast %35 : f32 to vector<8x128xf32>
      %37 = arith.cmpf oeq, %10, %36 : vector<8x128xf32>
      %cst_10 = arith.constant 1.000000e+00 : f32
      %cst_11 = arith.constant 0.000000e+00 : f32
      %38 = vector.broadcast %cst_10 : f32 to vector<8x128xf32>
      %39 = vector.broadcast %cst_11 : f32 to vector<8x128xf32>
      %40 = arith.select %37, %38, %39 : vector<8x128xi1>, vector<8x128xf32>
      %41 = vector.shape_cast %40 : vector<8x128xf32> to vector<1x8x128xf32>
      %cst_12 = arith.constant dense<0.000000e+00> : vector<1xf32>
      %42 = vector.multi_reduction <add>, %41, %cst_12 [1, 2] : vector<1x8x128xf32> to vector<1xf32>
      %43 = vector.shape_cast %42 : vector<1xf32> to vector<1x1x1xf32>
      %44 = vector.extract %43[0, 0, 0] : f32 from vector<1x1x1xf32>
      %cst_13 = arith.constant 0.000000e+00 : f32
      %45 = arith.addf %cst_13, %44 : f32
      %46 = vector.broadcast %35 : f32 to vector<8x128xf32>
      %47 = arith.cmpf oeq, %12, %46 : vector<8x128xf32>
      %cst_14 = arith.constant 1.000000e+00 : f32
      %cst_15 = arith.constant 0.000000e+00 : f32
      %48 = vector.broadcast %cst_14 : f32 to vector<8x128xf32>
      %49 = vector.broadcast %cst_15 : f32 to vector<8x128xf32>
      %50 = arith.select %47, %48, %49 : vector<8x128xi1>, vector<8x128xf32>
      %51 = vector.shape_cast %50 : vector<8x128xf32> to vector<1x8x128xf32>
      %cst_16 = arith.constant dense<0.000000e+00> : vector<1xf32>
      %52 = vector.multi_reduction <add>, %51, %cst_16 [1, 2] : vector<1x8x128xf32> to vector<1xf32>
      %53 = vector.shape_cast %52 : vector<1xf32> to vector<1x1x1xf32>
      %54 = vector.extract %53[0, 0, 0] : f32 from vector<1x1x1xf32>
      %55 = arith.addf %45, %54 : f32
      %56 = vector.broadcast %35 : f32 to vector<8x128xf32>
      %57 = arith.cmpf oeq, %14, %56 : vector<8x128xf32>
      %cst_17 = arith.constant 1.000000e+00 : f32
      %cst_18 = arith.constant 0.000000e+00 : f32
      %58 = vector.broadcast %cst_17 : f32 to vector<8x128xf32>
      %59 = vector.broadcast %cst_18 : f32 to vector<8x128xf32>
      %60 = arith.select %57, %58, %59 : vector<8x128xi1>, vector<8x128xf32>
      %61 = vector.shape_cast %60 : vector<8x128xf32> to vector<1x8x128xf32>
      %cst_19 = arith.constant dense<0.000000e+00> : vector<1xf32>
      %62 = vector.multi_reduction <add>, %61, %cst_19 [1, 2] : vector<1x8x128xf32> to vector<1xf32>
      %63 = vector.shape_cast %62 : vector<1xf32> to vector<1x1x1xf32>
      %64 = vector.extract %63[0, 0, 0] : f32 from vector<1x1x1xf32>
      %65 = arith.addf %55, %64 : f32
      %66 = vector.broadcast %35 : f32 to vector<8x128xf32>
      %67 = arith.cmpf oeq, %16, %66 : vector<8x128xf32>
      %cst_20 = arith.constant 1.000000e+00 : f32
      %cst_21 = arith.constant 0.000000e+00 : f32
      %68 = vector.broadcast %cst_20 : f32 to vector<8x128xf32>
      %69 = vector.broadcast %cst_21 : f32 to vector<8x128xf32>
      %70 = arith.select %67, %68, %69 : vector<8x128xi1>, vector<8x128xf32>
      %71 = vector.shape_cast %70 : vector<8x128xf32> to vector<1x8x128xf32>
      %cst_22 = arith.constant dense<0.000000e+00> : vector<1xf32>
      %72 = vector.multi_reduction <add>, %71, %cst_22 [1, 2] : vector<1x8x128xf32> to vector<1xf32>
      %73 = vector.shape_cast %72 : vector<1xf32> to vector<1x1x1xf32>
      %74 = vector.extract %73[0, 0, 0] : f32 from vector<1x1x1xf32>
      %75 = arith.addf %65, %74 : f32
      %cst_23 = arith.constant 4.000000e+00 : f32
      %76 = arith.minimumf %75, %cst_23 : f32
      %77 = arith.mulf %76, %35 : f32
      %cst_24 = arith.constant 0.000000e+00 : f32
      %78 = arith.addf %cst_24, %77 : f32
      %cst_25 = arith.constant 4.000000e+00 : f32
      %79 = arith.subf %cst_25, %76 : f32
      %80 = vector.broadcast %35 : f32 to vector<8x128xf32>
      %81 = arith.cmpf olt, %10, %80 : vector<8x128xf32>
      %cst_26 = arith.constant -1.000000e+00 : f32
      %82 = vector.broadcast %cst_26 : f32 to vector<8x128xf32>
      %83 = arith.select %81, %10, %82 : vector<8x128xi1>, vector<8x128xf32>
      %84 = vector.broadcast %35 : f32 to vector<8x128xf32>
      %85 = arith.cmpf olt, %12, %84 : vector<8x128xf32>
      %cst_27 = arith.constant -1.000000e+00 : f32
      %86 = vector.broadcast %cst_27 : f32 to vector<8x128xf32>
      %87 = arith.select %85, %12, %86 : vector<8x128xi1>, vector<8x128xf32>
      %88 = vector.broadcast %35 : f32 to vector<8x128xf32>
      %89 = arith.cmpf olt, %14, %88 : vector<8x128xf32>
      %cst_28 = arith.constant -1.000000e+00 : f32
      %90 = vector.broadcast %cst_28 : f32 to vector<8x128xf32>
      %91 = arith.select %89, %14, %90 : vector<8x128xi1>, vector<8x128xf32>
      %92 = vector.broadcast %35 : f32 to vector<8x128xf32>
      %93 = arith.cmpf olt, %16, %92 : vector<8x128xf32>
      %cst_29 = arith.constant -1.000000e+00 : f32
      %94 = vector.broadcast %cst_29 : f32 to vector<8x128xf32>
      %95 = arith.select %93, %16, %94 : vector<8x128xi1>, vector<8x128xf32>
      %96 = vector.shape_cast %83 : vector<8x128xf32> to vector<1x8x128xf32>
      %cst_30 = arith.constant dense<0xFF800000> : vector<1xf32>
      %97 = vector.multi_reduction <maximumf>, %96, %cst_30 [1, 2] : vector<1x8x128xf32> to vector<1xf32>
      %98 = vector.shape_cast %97 : vector<1xf32> to vector<1x1x1xf32>
      %99 = vector.extract %98[0, 0, 0] : f32 from vector<1x1x1xf32>
      %100 = vector.shape_cast %87 : vector<8x128xf32> to vector<1x8x128xf32>
      %cst_31 = arith.constant dense<0xFF800000> : vector<1xf32>
      %101 = vector.multi_reduction <maximumf>, %100, %cst_31 [1, 2] : vector<1x8x128xf32> to vector<1xf32>
      %102 = vector.shape_cast %101 : vector<1xf32> to vector<1x1x1xf32>
      %103 = vector.extract %102[0, 0, 0] : f32 from vector<1x1x1xf32>
      %104 = arith.maximumf %99, %103 : f32
      %105 = vector.shape_cast %91 : vector<8x128xf32> to vector<1x8x128xf32>
      %cst_32 = arith.constant dense<0xFF800000> : vector<1xf32>
      %106 = vector.multi_reduction <maximumf>, %105, %cst_32 [1, 2] : vector<1x8x128xf32> to vector<1xf32>
      %107 = vector.shape_cast %106 : vector<1xf32> to vector<1x1x1xf32>
      %108 = vector.extract %107[0, 0, 0] : f32 from vector<1x1x1xf32>
      %109 = arith.maximumf %104, %108 : f32
      %110 = vector.shape_cast %95 : vector<8x128xf32> to vector<1x8x128xf32>
      %cst_33 = arith.constant dense<0xFF800000> : vector<1xf32>
      %111 = vector.multi_reduction <maximumf>, %110, %cst_33 [1, 2] : vector<1x8x128xf32> to vector<1xf32>
      %112 = vector.shape_cast %111 : vector<1xf32> to vector<1x1x1xf32>
      %113 = vector.extract %112[0, 0, 0] : f32 from vector<1x1x1xf32>
      %114 = arith.maximumf %109, %113 : f32
      %115 = vector.broadcast %114 : f32 to vector<8x128xf32>
      %116 = arith.cmpf oeq, %10, %115 : vector<8x128xf32>
      %cst_34 = arith.constant 1.000000e+00 : f32
      %cst_35 = arith.constant 0.000000e+00 : f32
      %117 = vector.broadcast %cst_34 : f32 to vector<8x128xf32>
      %118 = vector.broadcast %cst_35 : f32 to vector<8x128xf32>
      %119 = arith.select %116, %117, %118 : vector<8x128xi1>, vector<8x128xf32>
      %120 = vector.shape_cast %119 : vector<8x128xf32> to vector<1x8x128xf32>
      %cst_36 = arith.constant dense<0.000000e+00> : vector<1xf32>
      %121 = vector.multi_reduction <add>, %120, %cst_36 [1, 2] : vector<1x8x128xf32> to vector<1xf32>
      %122 = vector.shape_cast %121 : vector<1xf32> to vector<1x1x1xf32>
      %123 = vector.extract %122[0, 0, 0] : f32 from vector<1x1x1xf32>
      %cst_37 = arith.constant 0.000000e+00 : f32
      %124 = arith.addf %cst_37, %123 : f32
      %125 = vector.broadcast %114 : f32 to vector<8x128xf32>
      %126 = arith.cmpf oeq, %12, %125 : vector<8x128xf32>
      %cst_38 = arith.constant 1.000000e+00 : f32
      %cst_39 = arith.constant 0.000000e+00 : f32
      %127 = vector.broadcast %cst_38 : f32 to vector<8x128xf32>
      %128 = vector.broadcast %cst_39 : f32 to vector<8x128xf32>
      %129 = arith.select %126, %127, %128 : vector<8x128xi1>, vector<8x128xf32>
      %130 = vector.shape_cast %129 : vector<8x128xf32> to vector<1x8x128xf32>
      %cst_40 = arith.constant dense<0.000000e+00> : vector<1xf32>
      %131 = vector.multi_reduction <add>, %130, %cst_40 [1, 2] : vector<1x8x128xf32> to vector<1xf32>
      %132 = vector.shape_cast %131 : vector<1xf32> to vector<1x1x1xf32>
      %133 = vector.extract %132[0, 0, 0] : f32 from vector<1x1x1xf32>
      %134 = arith.addf %124, %133 : f32
      %135 = vector.broadcast %114 : f32 to vector<8x128xf32>
      %136 = arith.cmpf oeq, %14, %135 : vector<8x128xf32>
      %cst_41 = arith.constant 1.000000e+00 : f32
      %cst_42 = arith.constant 0.000000e+00 : f32
      %137 = vector.broadcast %cst_41 : f32 to vector<8x128xf32>
      %138 = vector.broadcast %cst_42 : f32 to vector<8x128xf32>
      %139 = arith.select %136, %137, %138 : vector<8x128xi1>, vector<8x128xf32>
      %140 = vector.shape_cast %139 : vector<8x128xf32> to vector<1x8x128xf32>
      %cst_43 = arith.constant dense<0.000000e+00> : vector<1xf32>
      %141 = vector.multi_reduction <add>, %140, %cst_43 [1, 2] : vector<1x8x128xf32> to vector<1xf32>
      %142 = vector.shape_cast %141 : vector<1xf32> to vector<1x1x1xf32>
      %143 = vector.extract %142[0, 0, 0] : f32 from vector<1x1x1xf32>
      %144 = arith.addf %134, %143 : f32
      %145 = vector.broadcast %114 : f32 to vector<8x128xf32>
      %146 = arith.cmpf oeq, %16, %145 : vector<8x128xf32>
      %cst_44 = arith.constant 1.000000e+00 : f32
      %cst_45 = arith.constant 0.000000e+00 : f32
      %147 = vector.broadcast %cst_44 : f32 to vector<8x128xf32>
      %148 = vector.broadcast %cst_45 : f32 to vector<8x128xf32>
      %149 = arith.select %146, %147, %148 : vector<8x128xi1>, vector<8x128xf32>
      %150 = vector.shape_cast %149 : vector<8x128xf32> to vector<1x8x128xf32>
      %cst_46 = arith.constant dense<0.000000e+00> : vector<1xf32>
      %151 = vector.multi_reduction <add>, %150, %cst_46 [1, 2] : vector<1x8x128xf32> to vector<1xf32>
      %152 = vector.shape_cast %151 : vector<1xf32> to vector<1x1x1xf32>
      %153 = vector.extract %152[0, 0, 0] : f32 from vector<1x1x1xf32>
      %154 = arith.addf %144, %153 : f32
      %155 = arith.minimumf %154, %79 : f32
      %156 = arith.mulf %155, %114 : f32
      %157 = arith.addf %78, %156 : f32
      %158 = arith.subf %79, %155 : f32
      %159 = vector.broadcast %114 : f32 to vector<8x128xf32>
      %160 = arith.cmpf olt, %10, %159 : vector<8x128xf32>
      %cst_47 = arith.constant -1.000000e+00 : f32
      %161 = vector.broadcast %cst_47 : f32 to vector<8x128xf32>
      %162 = arith.select %160, %10, %161 : vector<8x128xi1>, vector<8x128xf32>
      %163 = vector.broadcast %114 : f32 to vector<8x128xf32>
      %164 = arith.cmpf olt, %12, %163 : vector<8x128xf32>
      %cst_48 = arith.constant -1.000000e+00 : f32
      %165 = vector.broadcast %cst_48 : f32 to vector<8x128xf32>
      %166 = arith.select %164, %12, %165 : vector<8x128xi1>, vector<8x128xf32>
      %167 = vector.broadcast %114 : f32 to vector<8x128xf32>
      %168 = arith.cmpf olt, %14, %167 : vector<8x128xf32>
      %cst_49 = arith.constant -1.000000e+00 : f32
      %169 = vector.broadcast %cst_49 : f32 to vector<8x128xf32>
      %170 = arith.select %168, %14, %169 : vector<8x128xi1>, vector<8x128xf32>
      %171 = vector.broadcast %114 : f32 to vector<8x128xf32>
      %172 = arith.cmpf olt, %16, %171 : vector<8x128xf32>
      %cst_50 = arith.constant -1.000000e+00 : f32
      %173 = vector.broadcast %cst_50 : f32 to vector<8x128xf32>
      %174 = arith.select %172, %16, %173 : vector<8x128xi1>, vector<8x128xf32>
      %175 = vector.shape_cast %162 : vector<8x128xf32> to vector<1x8x128xf32>
      %cst_51 = arith.constant dense<0xFF800000> : vector<1xf32>
      %176 = vector.multi_reduction <maximumf>, %175, %cst_51 [1, 2] : vector<1x8x128xf32> to vector<1xf32>
      %177 = vector.shape_cast %176 : vector<1xf32> to vector<1x1x1xf32>
      %178 = vector.extract %177[0, 0, 0] : f32 from vector<1x1x1xf32>
      %179 = vector.shape_cast %166 : vector<8x128xf32> to vector<1x8x128xf32>
      %cst_52 = arith.constant dense<0xFF800000> : vector<1xf32>
      %180 = vector.multi_reduction <maximumf>, %179, %cst_52 [1, 2] : vector<1x8x128xf32> to vector<1xf32>
      %181 = vector.shape_cast %180 : vector<1xf32> to vector<1x1x1xf32>
      %182 = vector.extract %181[0, 0, 0] : f32 from vector<1x1x1xf32>
      %183 = arith.maximumf %178, %182 : f32
      %184 = vector.shape_cast %170 : vector<8x128xf32> to vector<1x8x128xf32>
      %cst_53 = arith.constant dense<0xFF800000> : vector<1xf32>
      %185 = vector.multi_reduction <maximumf>, %184, %cst_53 [1, 2] : vector<1x8x128xf32> to vector<1xf32>
      %186 = vector.shape_cast %185 : vector<1xf32> to vector<1x1x1xf32>
      %187 = vector.extract %186[0, 0, 0] : f32 from vector<1x1x1xf32>
      %188 = arith.maximumf %183, %187 : f32
      %189 = vector.shape_cast %174 : vector<8x128xf32> to vector<1x8x128xf32>
      %cst_54 = arith.constant dense<0xFF800000> : vector<1xf32>
      %190 = vector.multi_reduction <maximumf>, %189, %cst_54 [1, 2] : vector<1x8x128xf32> to vector<1xf32>
      %191 = vector.shape_cast %190 : vector<1xf32> to vector<1x1x1xf32>
      %192 = vector.extract %191[0, 0, 0] : f32 from vector<1x1x1xf32>
      %193 = arith.maximumf %188, %192 : f32
      %194 = vector.broadcast %193 : f32 to vector<8x128xf32>
      %195 = arith.cmpf oeq, %10, %194 : vector<8x128xf32>
      %cst_55 = arith.constant 1.000000e+00 : f32
      %cst_56 = arith.constant 0.000000e+00 : f32
      %196 = vector.broadcast %cst_55 : f32 to vector<8x128xf32>
      %197 = vector.broadcast %cst_56 : f32 to vector<8x128xf32>
      %198 = arith.select %195, %196, %197 : vector<8x128xi1>, vector<8x128xf32>
      %199 = vector.shape_cast %198 : vector<8x128xf32> to vector<1x8x128xf32>
      %cst_57 = arith.constant dense<0.000000e+00> : vector<1xf32>
      %200 = vector.multi_reduction <add>, %199, %cst_57 [1, 2] : vector<1x8x128xf32> to vector<1xf32>
      %201 = vector.shape_cast %200 : vector<1xf32> to vector<1x1x1xf32>
      %202 = vector.extract %201[0, 0, 0] : f32 from vector<1x1x1xf32>
      %cst_58 = arith.constant 0.000000e+00 : f32
      %203 = arith.addf %cst_58, %202 : f32
      %204 = vector.broadcast %193 : f32 to vector<8x128xf32>
      %205 = arith.cmpf oeq, %12, %204 : vector<8x128xf32>
      %cst_59 = arith.constant 1.000000e+00 : f32
      %cst_60 = arith.constant 0.000000e+00 : f32
      %206 = vector.broadcast %cst_59 : f32 to vector<8x128xf32>
      %207 = vector.broadcast %cst_60 : f32 to vector<8x128xf32>
      %208 = arith.select %205, %206, %207 : vector<8x128xi1>, vector<8x128xf32>
      %209 = vector.shape_cast %208 : vector<8x128xf32> to vector<1x8x128xf32>
      %cst_61 = arith.constant dense<0.000000e+00> : vector<1xf32>
      %210 = vector.multi_reduction <add>, %209, %cst_61 [1, 2] : vector<1x8x128xf32> to vector<1xf32>
      %211 = vector.shape_cast %210 : vector<1xf32> to vector<1x1x1xf32>
      %212 = vector.extract %211[0, 0, 0] : f32 from vector<1x1x1xf32>
      %213 = arith.addf %203, %212 : f32
      %214 = vector.broadcast %193 : f32 to vector<8x128xf32>
      %215 = arith.cmpf oeq, %14, %214 : vector<8x128xf32>
      %cst_62 = arith.constant 1.000000e+00 : f32
      %cst_63 = arith.constant 0.000000e+00 : f32
      %216 = vector.broadcast %cst_62 : f32 to vector<8x128xf32>
      %217 = vector.broadcast %cst_63 : f32 to vector<8x128xf32>
      %218 = arith.select %215, %216, %217 : vector<8x128xi1>, vector<8x128xf32>
      %219 = vector.shape_cast %218 : vector<8x128xf32> to vector<1x8x128xf32>
      %cst_64 = arith.constant dense<0.000000e+00> : vector<1xf32>
      %220 = vector.multi_reduction <add>, %219, %cst_64 [1, 2] : vector<1x8x128xf32> to vector<1xf32>
      %221 = vector.shape_cast %220 : vector<1xf32> to vector<1x1x1xf32>
      %222 = vector.extract %221[0, 0, 0] : f32 from vector<1x1x1xf32>
      %223 = arith.addf %213, %222 : f32
      %224 = vector.broadcast %193 : f32 to vector<8x128xf32>
      %225 = arith.cmpf oeq, %16, %224 : vector<8x128xf32>
      %cst_65 = arith.constant 1.000000e+00 : f32
      %cst_66 = arith.constant 0.000000e+00 : f32
      %226 = vector.broadcast %cst_65 : f32 to vector<8x128xf32>
      %227 = vector.broadcast %cst_66 : f32 to vector<8x128xf32>
      %228 = arith.select %225, %226, %227 : vector<8x128xi1>, vector<8x128xf32>
      %229 = vector.shape_cast %228 : vector<8x128xf32> to vector<1x8x128xf32>
      %cst_67 = arith.constant dense<0.000000e+00> : vector<1xf32>
      %230 = vector.multi_reduction <add>, %229, %cst_67 [1, 2] : vector<1x8x128xf32> to vector<1xf32>
      %231 = vector.shape_cast %230 : vector<1xf32> to vector<1x1x1xf32>
      %232 = vector.extract %231[0, 0, 0] : f32 from vector<1x1x1xf32>
      %233 = arith.addf %223, %232 : f32
      %234 = arith.minimumf %233, %158 : f32
      %235 = arith.mulf %234, %193 : f32
      %236 = arith.addf %157, %235 : f32
      %237 = arith.subf %158, %234 : f32
      %238 = vector.broadcast %193 : f32 to vector<8x128xf32>
      %239 = arith.cmpf olt, %10, %238 : vector<8x128xf32>
      %cst_68 = arith.constant -1.000000e+00 : f32
      %240 = vector.broadcast %cst_68 : f32 to vector<8x128xf32>
      %241 = arith.select %239, %10, %240 : vector<8x128xi1>, vector<8x128xf32>
      %242 = vector.broadcast %193 : f32 to vector<8x128xf32>
      %243 = arith.cmpf olt, %12, %242 : vector<8x128xf32>
      %cst_69 = arith.constant -1.000000e+00 : f32
      %244 = vector.broadcast %cst_69 : f32 to vector<8x128xf32>
      %245 = arith.select %243, %12, %244 : vector<8x128xi1>, vector<8x128xf32>
      %246 = vector.broadcast %193 : f32 to vector<8x128xf32>
      %247 = arith.cmpf olt, %14, %246 : vector<8x128xf32>
      %cst_70 = arith.constant -1.000000e+00 : f32
      %248 = vector.broadcast %cst_70 : f32 to vector<8x128xf32>
      %249 = arith.select %247, %14, %248 : vector<8x128xi1>, vector<8x128xf32>
      %250 = vector.broadcast %193 : f32 to vector<8x128xf32>
      %251 = arith.cmpf olt, %16, %250 : vector<8x128xf32>
      %cst_71 = arith.constant -1.000000e+00 : f32
      %252 = vector.broadcast %cst_71 : f32 to vector<8x128xf32>
      %253 = arith.select %251, %16, %252 : vector<8x128xi1>, vector<8x128xf32>
      %254 = vector.shape_cast %241 : vector<8x128xf32> to vector<1x8x128xf32>
      %cst_72 = arith.constant dense<0xFF800000> : vector<1xf32>
      %255 = vector.multi_reduction <maximumf>, %254, %cst_72 [1, 2] : vector<1x8x128xf32> to vector<1xf32>
      %256 = vector.shape_cast %255 : vector<1xf32> to vector<1x1x1xf32>
      %257 = vector.extract %256[0, 0, 0] : f32 from vector<1x1x1xf32>
      %258 = vector.shape_cast %245 : vector<8x128xf32> to vector<1x8x128xf32>
      %cst_73 = arith.constant dense<0xFF800000> : vector<1xf32>
      %259 = vector.multi_reduction <maximumf>, %258, %cst_73 [1, 2] : vector<1x8x128xf32> to vector<1xf32>
      %260 = vector.shape_cast %259 : vector<1xf32> to vector<1x1x1xf32>
      %261 = vector.extract %260[0, 0, 0] : f32 from vector<1x1x1xf32>
      %262 = arith.maximumf %257, %261 : f32
      %263 = vector.shape_cast %249 : vector<8x128xf32> to vector<1x8x128xf32>
      %cst_74 = arith.constant dense<0xFF800000> : vector<1xf32>
      %264 = vector.multi_reduction <maximumf>, %263, %cst_74 [1, 2] : vector<1x8x128xf32> to vector<1xf32>
      %265 = vector.shape_cast %264 : vector<1xf32> to vector<1x1x1xf32>
      %266 = vector.extract %265[0, 0, 0] : f32 from vector<1x1x1xf32>
      %267 = arith.maximumf %262, %266 : f32
      %268 = vector.shape_cast %253 : vector<8x128xf32> to vector<1x8x128xf32>
      %cst_75 = arith.constant dense<0xFF800000> : vector<1xf32>
      %269 = vector.multi_reduction <maximumf>, %268, %cst_75 [1, 2] : vector<1x8x128xf32> to vector<1xf32>
      %270 = vector.shape_cast %269 : vector<1xf32> to vector<1x1x1xf32>
      %271 = vector.extract %270[0, 0, 0] : f32 from vector<1x1x1xf32>
      %272 = arith.maximumf %267, %271 : f32
      %273 = vector.broadcast %272 : f32 to vector<8x128xf32>
      %274 = arith.cmpf oeq, %10, %273 : vector<8x128xf32>
      %cst_76 = arith.constant 1.000000e+00 : f32
      %cst_77 = arith.constant 0.000000e+00 : f32
      %275 = vector.broadcast %cst_76 : f32 to vector<8x128xf32>
      %276 = vector.broadcast %cst_77 : f32 to vector<8x128xf32>
      %277 = arith.select %274, %275, %276 : vector<8x128xi1>, vector<8x128xf32>
      %278 = vector.shape_cast %277 : vector<8x128xf32> to vector<1x8x128xf32>
      %cst_78 = arith.constant dense<0.000000e+00> : vector<1xf32>
      %279 = vector.multi_reduction <add>, %278, %cst_78 [1, 2] : vector<1x8x128xf32> to vector<1xf32>
      %280 = vector.shape_cast %279 : vector<1xf32> to vector<1x1x1xf32>
      %281 = vector.extract %280[0, 0, 0] : f32 from vector<1x1x1xf32>
      %cst_79 = arith.constant 0.000000e+00 : f32
      %282 = arith.addf %cst_79, %281 : f32
      %283 = vector.broadcast %272 : f32 to vector<8x128xf32>
      %284 = arith.cmpf oeq, %12, %283 : vector<8x128xf32>
      %cst_80 = arith.constant 1.000000e+00 : f32
      %cst_81 = arith.constant 0.000000e+00 : f32
      %285 = vector.broadcast %cst_80 : f32 to vector<8x128xf32>
      %286 = vector.broadcast %cst_81 : f32 to vector<8x128xf32>
      %287 = arith.select %284, %285, %286 : vector<8x128xi1>, vector<8x128xf32>
      %288 = vector.shape_cast %287 : vector<8x128xf32> to vector<1x8x128xf32>
      %cst_82 = arith.constant dense<0.000000e+00> : vector<1xf32>
      %289 = vector.multi_reduction <add>, %288, %cst_82 [1, 2] : vector<1x8x128xf32> to vector<1xf32>
      %290 = vector.shape_cast %289 : vector<1xf32> to vector<1x1x1xf32>
      %291 = vector.extract %290[0, 0, 0] : f32 from vector<1x1x1xf32>
      %292 = arith.addf %282, %291 : f32
      %293 = vector.broadcast %272 : f32 to vector<8x128xf32>
      %294 = arith.cmpf oeq, %14, %293 : vector<8x128xf32>
      %cst_83 = arith.constant 1.000000e+00 : f32
      %cst_84 = arith.constant 0.000000e+00 : f32
      %295 = vector.broadcast %cst_83 : f32 to vector<8x128xf32>
      %296 = vector.broadcast %cst_84 : f32 to vector<8x128xf32>
      %297 = arith.select %294, %295, %296 : vector<8x128xi1>, vector<8x128xf32>
      %298 = vector.shape_cast %297 : vector<8x128xf32> to vector<1x8x128xf32>
      %cst_85 = arith.constant dense<0.000000e+00> : vector<1xf32>
      %299 = vector.multi_reduction <add>, %298, %cst_85 [1, 2] : vector<1x8x128xf32> to vector<1xf32>
      %300 = vector.shape_cast %299 : vector<1xf32> to vector<1x1x1xf32>
      %301 = vector.extract %300[0, 0, 0] : f32 from vector<1x1x1xf32>
      %302 = arith.addf %292, %301 : f32
      %303 = vector.broadcast %272 : f32 to vector<8x128xf32>
      %304 = arith.cmpf oeq, %16, %303 : vector<8x128xf32>
      %cst_86 = arith.constant 1.000000e+00 : f32
      %cst_87 = arith.constant 0.000000e+00 : f32
      %305 = vector.broadcast %cst_86 : f32 to vector<8x128xf32>
      %306 = vector.broadcast %cst_87 : f32 to vector<8x128xf32>
      %307 = arith.select %304, %305, %306 : vector<8x128xi1>, vector<8x128xf32>
      %308 = vector.shape_cast %307 : vector<8x128xf32> to vector<1x8x128xf32>
      %cst_88 = arith.constant dense<0.000000e+00> : vector<1xf32>
      %309 = vector.multi_reduction <add>, %308, %cst_88 [1, 2] : vector<1x8x128xf32> to vector<1xf32>
      %310 = vector.shape_cast %309 : vector<1xf32> to vector<1x1x1xf32>
      %311 = vector.extract %310[0, 0, 0] : f32 from vector<1x1x1xf32>
      %312 = arith.addf %302, %311 : f32
      %313 = arith.minimumf %312, %237 : f32
      %314 = arith.mulf %313, %272 : f32
      %315 = arith.addf %236, %314 : f32
      %316 = vector.broadcast %315 : f32 to vector<1x1x1xf32>
      %c0_89 = arith.constant 0 : index
      %c0_90 = arith.constant 0 : index
      %c0_91 = arith.constant 0 : index
      %317 = vector.load %arg4[%c0_89, %c0_90, %c0_91] : memref<1x1x1xf32, #tpu.memory_space<vmem>>, vector<1x1x1xf32>
      tpu.vector_store %arg4[%c0_89, %c0_90, %c0_91], %316 {strides = array<i32>} : memref<1x1x1xf32, #tpu.memory_space<vmem>>, vector<1x1x1xf32>,
    } else {
    }
    return
  }
  func.func @transform_0(%arg0: i32, %arg1: i32) -> (i32, i32, i32) {
    %c0_i32 = arith.constant 0 : i32
    %c0_i32_0 = arith.constant 0 : i32
    return %arg0, %arg1, %c0_i32 : i32, i32, i32
  }
  func.func @transform_1(%arg0: i32, %arg1: i32) -> (i32, i32, i32) {
    %c0_i32 = arith.constant 0 : i32
    %c0_i32_0 = arith.constant 0 : i32
    return %arg0, %arg1, %c0_i32 : i32, i32, i32
  }
  func.func @transform_2(%arg0: i32, %arg1: i32) -> (i32, i32, i32) {
    %c0_i32 = arith.constant 0 : i32
    %c0_i32_0 = arith.constant 0 : i32
    %c0_i32_1 = arith.constant 0 : i32
    return %arg0, %c0_i32, %c0_i32_0 : i32, i32, i32
  }
}

</mosaic_0001>

<llo_original>
// kernel: tpu_custom_call.1
$region0: #{tpu_custom_call.1}
  #allocation0 [shape = 'u32[]', space=smem, size = 0x4, offset = 0x4, fixed_abs, tag = 'smem constant byte address 0x4 - core index']
  #allocation1 [shape = 'u32[144,128]{1,0:T(1,128)}', space=vmem, size = 0x12000, scoped, tag = 'internal scratch']
  #allocation2 [shape = 'f32[4,8,128]{2,1,0:T(8,128)}', space=vmem, size = 0x4000, scoped, tag = 'scratch operand']
  %s0 = inlined_call_operand.hbm [shape: f32[2,8,128], index: 0, kind: input, shape index: {}]
  %s1 = inlined_call_operand.hbm [shape: f32[2,8,128], index: 1, kind: input, shape index: {}]
  %s2 = inlined_call_operand.vmem [shape: f32[2,1,1], index: 2, kind: output, shape index: {}]
  %s3 = sld [smem:[#allocation0]]
  $region53: #{tpu_custom_call.1} parent=0
    _
  %s5 = ssub.s32 1, %s3
  %s6 = scalar_select 0, %s5, %s3
  $region1: #{tpu_custom_call.1} parent=0
    #allocation3 [shape = 'u8[8192]{0}', space=vmem, size = 0x2000, scoped, tag = 'input window, operand 0']
    #allocation4 [shape = 's32[2]{0}', space=sflag, size = 0x8, scoped, tag = 'scoped memory for tpu_custom_call.1']
    #allocation5 [shape = 'u8[8192]{0}', space=vmem, size = 0x2000, scoped, tag = 'input window, operand 1']
    #allocation6 [shape = 's32[2]{0}', space=sflag, size = 0x8, scoped, tag = 'scoped memory for tpu_custom_call.1']
    %7 = vsyncpa [#allocation4], 0
    %s8 = scalar_lea.sflag [#allocation4], 1
    %9 = vsyncpa %s8, 0
    %10 = vsyncpa [#allocation6], 0
    %s11 = scalar_lea.sflag [#allocation6], 1
    %12 = vsyncpa %s11, 0
    loop: start=0, step=1, limit=4
    $region2: #{tpu_custom_call.1} parent=1 // loop_pre_header
      _
    $region3: #{tpu_custom_call.1} parent=1 // loop_header
      %s14 = sphi 0, %s18
      %p15 = scmp.ge.s32.totalorder %s14, 4
      %s21 = sphi 0, %s33
      %s22 = sphi 0, %s29
      %s23 = sphi 0, %s21
      %s24 = sphi 0, %s22
      %s25 = sphi 0, %s23
      %s26 = sphi 0, %s24
      %s38 = sphi 0, %s40
      %s41 = sphi 0, %s38
      %s42 = sphi 0, %s41
      %s58 = sphi 0, %s42
      %s66 = sphi 0, %s68
      %s69 = sphi 0, %s66
      %s70 = sphi 0, %s69
      %s86 = sphi 0, %s70
      %s92 = sphi 0, %s94
      %s95 = sphi 0, %s92
      %s96 = sphi 0, %s95
      %s112 = sphi 0, %s96
    $region4: #{tpu_custom_call.1} parent=1 // loop_header_branch
      %17 = sbr.rel (%p15) target = $region8
    $region5: #{tpu_custom_call.1} parent=1 // loop_body
      %s19 = ssub.s32 %s14, 1
      %s20 = ssub.s32 %s14, 2
      %s27 = sadd.s32 1, %s22
      %p28 = scmp.ge.s32.totalorder %s27, 1
      %s29 = scalar_select %p28, 0, %s27
      %s30 = sadd.s32 1, %s21
      %s31 = scalar_select %p28, %s30, %s21
      %p32 = scmp.ge.s32.totalorder %s31, 2
      %s33 = scalar_select %p32, 0, %s31
      %s34 = ssub.s32 %s21, %s33
      %s35 = ssub.s32 %s22, %s29
      %s36 = sor.u32 %s34, %s35
      %p37 = scmp.eq.s32.totalorder %s36, 0
      %s39 = sadd.s32 %s38, 1
      %s40 = scalar_select %p37, %s38, %s39
      %p43 = pneg %p37
      %p44 = scmp.eq.s32.totalorder %s14, 1
      %p45 = por %p43, %p44
      %p46 = scmp.ne.s32.totalorder %s38, %s41
      %p47 = scmp.eq.s32.totalorder %s14, 0
      %p48 = por %p46, %p47
      %p49 = scmp.ne.s32.totalorder %s38, %s41
      %p50 = scmp.eq.s32.totalorder %s19, 1
      %p51 = por %p49, %p50
      %p52 = scmp.ne.s32.totalorder %s41, %s42
      %p53 = scmp.eq.s32.totalorder %s19, 0
      %p54 = por %p52, %p53
      %p55 = scmp.ne.s32.totalorder %s41, %s42
      %p56 = scmp.eq.s32.totalorder %s20, 1
      %p57 = por %p55, %p56
      %p59 = scmp.ne.s32.totalorder %s42, %s58
      %p60 = scmp.eq.s32.totalorder %s20, 0
      %p61 = por %p59, %p60
      %s62 = ssub.s32 %s21, %s33
      %s63 = ssub.s32 %s22, %s29
      %s64 = sor.u32 %s62, %s63
      %p65 = scmp.eq.s32.totalorder %s64, 0
      %s67 = sadd.s32 %s66, 1
      %s68 = scalar_select %p65, %s66, %s67
      %p71 = pneg %p65
      %p72 = scmp.eq.s32.totalorder %s14, 1
      %p73 = por %p71, %p72
      %p74 = scmp.ne.s32.totalorder %s66, %s69
      %p75 = scmp.eq.s32.totalorder %s14, 0
      %p76 = por %p74, %p75
      %p77 = scmp.ne.s32.totalorder %s66, %s69
      %p78 = scmp.eq.s32.totalorder %s19, 1
      %p79 = por %p77, %p78
      %p80 = scmp.ne.s32.totalorder %s69, %s70
      %p81 = scmp.eq.s32.totalorder %s19, 0
      %p82 = por %p80, %p81
      %p83 = scmp.ne.s32.totalorder %s69, %s70
      %p84 = scmp.eq.s32.totalorder %s20, 1
      %p85 = por %p83, %p84
      %p87 = scmp.ne.s32.totalorder %s70, %s86
      %p88 = scmp.eq.s32.totalorder %s20, 0
      %p89 = por %p87, %p88
      %s90 = ssub.s32 %s21, %s33
      %p91 = scmp.eq.s32.totalorder %s90, 0
      %s93 = sadd.s32 %s92, 1
      %s94 = scalar_select %p91, %s92, %s93
      %p97 = pneg %p91
      %p98 = scmp.eq.s32.totalorder %s14, 1
      %p99 = por %p97, %p98
      %p100 = scmp.ne.s32.totalorder %s92, %s95
      %p101 = scmp.eq.s32.totalorder %s14, 0
      %p102 = por %p100, %p101
      %p103 = scmp.ne.s32.totalorder %s92, %s95
      %p104 = scmp.eq.s32.totalorder %s19, 1
      %p105 = por %p103, %p104
      %p106 = scmp.ne.s32.totalorder %s95, %s96
      %p107 = scmp.eq.s32.totalorder %s19, 0
      %p108 = por %p106, %p107
      %p109 = scmp.ne.s32.totalorder %s95, %s96
      %p110 = scmp.eq.s32.totalorder %s20, 1
      %p111 = por %p109, %p110
      %p113 = scmp.ne.s32.totalorder %s96, %s112
      %p114 = scmp.eq.s32.totalorder %s20, 0
      %p115 = por %p113, %p114
      %p116 = scmp.le.s32.totalorder 1, %s14
      %p117 = scmp.lt.s32.totalorder %s14, 3
      %p118 = pnand %p116, %p117
      %p119 = pneg %p118
      // Predicated region
      $region9: #{tpu_custom_call.1} parent=5 // pred_check
        _
      $region10: #{tpu_custom_call.1} parent=5 // pred_check_branch
        %121 = sbr.rel (%p118) target = $region12
      $region11: #{tpu_custom_call.1} parent=5 // pred_region
        %s122 = ssub.s32 %s14, 1
      $region12: #{tpu_custom_call.1} parent=5 // pred_fallthru
        _
      %p123 = scmp.lt.s32.totalorder %s14, 2
      // Predicated region
      $region13: #{tpu_custom_call.1} parent=5 // pred_check
        %p124 = pneg %p123
      $region14: #{tpu_custom_call.1} parent=5 // pred_check_branch
        %126 = sbr.rel (%p124) target = $region16
      $region15: #{tpu_custom_call.1} parent=5 // pred_region
        // Predicated region
        $region17: #{tpu_custom_call.1} parent=15 // pred_check
          %p127 = pneg %p48
        $region18: #{tpu_custom_call.1} parent=15 // pred_check_branch
          %129 = sbr.rel (%p127) target = $region20
        $region19: #{tpu_custom_call.1} parent=15 // pred_region
          %s130 = sand.u32 %s38, 1
          %s131 = scalar_lea.sflag [#allocation4], %s130
          %s132 = sand.u32 %s38, 1
          %s133 = smul.addr %s132, 8
          %s134 = scalar_lea.vmem [#allocation3], %s133
          %s136 = ssub.s32 128, 128
          %137 = vsyncadd %s131, %s136
          %s138 = sadd.s32 %s22, %s21
          %s139 = smul.addr %s138, 128
          %s140 = scalar_lea.hbm %s0, %s139
          %s142 = sshll.u32 %s134, 4
          %s143 = int_to_ptr.vmem [resolvable:$true] %s142
          %145 = dma.hbm_to_vmem [thread:$0]  %s140, 128, %s143, %s131
        $region20: #{tpu_custom_call.1} parent=15 // pred_fallthru
          _
        // Predicated region
        $region21: #{tpu_custom_call.1} parent=15 // pred_check
          %p146 = pneg %p76
        $region22: #{tpu_custom_call.1} parent=15 // pred_check_branch
          %148 = sbr.rel (%p146) target = $region24
        $region23: #{tpu_custom_call.1} parent=15 // pred_region
          %s149 = sand.u32 %s66, 1
          %s150 = scalar_lea.sflag [#allocation6], %s149
          %s151 = sand.u32 %s66, 1
          %s152 = smul.addr %s151, 8
          %s153 = scalar_lea.vmem [#allocation5], %s152
          %s155 = ssub.s32 128, 128
          %156 = vsyncadd %s150, %s155
          %s157 = sadd.s32 %s22, %s21
          %s158 = smul.addr %s157, 128
          %s159 = scalar_lea.hbm %s1, %s158
          %s161 = sshll.u32 %s153, 4
          %s162 = int_to_ptr.vmem [resolvable:$true] %s161
          %164 = dma.hbm_to_vmem [thread:$0]  %s159, 128, %s162, %s150
        $region24: #{tpu_custom_call.1} parent=15 // pred_fallthru
          _
      $region16: #{tpu_custom_call.1} parent=5 // pred_fallthru
        _
      %p165 = scmp.le.s32.totalorder 1, %s14
      %p166 = scmp.lt.s32.totalorder %s14, 3
      %p167 = pnand %p165, %p166
      %p168 = pneg %p167
      // Predicated region
      $region25: #{tpu_custom_call.1} parent=5 // pred_check
        _
      $region26: #{tpu_custom_call.1} parent=5 // pred_check_branch
        %170 = sbr.rel (%p167) target = $region28
      $region27: #{tpu_custom_call.1} parent=5 // pred_region
        %s171 = ssub.s32 %s14, 1
        %s172 = sand.u32 %s41, 1
        %s173 = scalar_lea.sflag [#allocation4], %s172
        %s174 = sand.u32 %s41, 1
        %s175 = smul.addr %s174, 8
        %s176 = scalar_lea.vmem [#allocation3], %s175
        // Predicated region
        $region29: #{tpu_custom_call.1} parent=27 // pred_check
          %p177 = pneg %p54
        $region30: #{tpu_custom_call.1} parent=27 // pred_check_branch
          %179 = sbr.rel (%p177) target = $region32
        $region31: #{tpu_custom_call.1} parent=27 // pred_region
          %180 = dma.done %s173, 128
        $region32: #{tpu_custom_call.1} parent=27 // pred_fallthru
          _
        %s181 = sand.u32 %s69, 1
        %s182 = scalar_lea.sflag [#allocation6], %s181
        %s183 = sand.u32 %s69, 1
        %s184 = smul.addr %s183, 8
        %s185 = scalar_lea.vmem [#allocation5], %s184
        // Predicated region
        $region33: #{tpu_custom_call.1} parent=27 // pred_check
          %p186 = pneg %p82
        $region34: #{tpu_custom_call.1} parent=27 // pred_check_branch
          %188 = sbr.rel (%p186) target = $region36
        $region35: #{tpu_custom_call.1} parent=27 // pred_region
          %189 = dma.done %s182, 128
        $region36: #{tpu_custom_call.1} parent=27 // pred_fallthru
          _
        %s190 = sand.u32 %s41, 1
        %s191 = scalar_lea.sflag [#allocation4], %s190
        %s192 = sand.u32 %s41, 1
        %s193 = smul.addr %s192, 8
        %s194 = scalar_lea.vmem [#allocation3], %s193
        %p195 = pneg %p54
        %p196 = pneg %p51
        %s197 = sand.u32 %s69, 1
        %s198 = scalar_lea.sflag [#allocation6], %s197
        %s199 = sand.u32 %s69, 1
        %s200 = smul.addr %s199, 8
        %s201 = scalar_lea.vmem [#allocation5], %s200
        %p202 = pneg %p82
        %p203 = pneg %p79
        %p204 = pneg %p108
        %p205 = pneg %p105
        %p206 = scmp.lt.s32.totalorder %s23, 1
        %s207 = scalar_select %p206, %s23, 1
        %s208 = scalar_lea.vmem %s2, %s207
        %p209 = scmp.lt.s32.totalorder %s23, 1
        %s210 = scalar_select %p209, %s23, 1
        %s211 = scalar_lea.vmem %s2, %s210
        %p212 = scmp.eq.s32.totalorder %s24, 0
        // Predicated region
        $region37: #{tpu_custom_call.1} parent=27 // pred_check
          %p213 = pneg %p212
        $region38: #{tpu_custom_call.1} parent=27 // pred_check_branch
          %215 = sbr.rel (%p213) target = $region40
        $region39: #{tpu_custom_call.1} parent=27 // pred_region
          %v216 = vld [vmem:[%s176] sm:$0xff]
          %v217 = vld [vmem:[%s185] sm:$0xff]
          %v218 = vsub.f32 %v216, %v217
          %v219 = vmul.f32 %v218, %v218
          %v220 = vmax.f32 %v219, 0.0
          %v221 = vmin.f32 %v219, 0.0
          %v222 = vmax.f32 %v221, 0.0
          %v223 = vmin.f32 %v221, 0.0
          %v224 = vmax.f32 %v223, 0.0
          %v225 = vmin.f32 %v223, 0.0
          %v226 = vmax.f32 %v225, 0.0
          %227 = vmax.xlane.f32.xlu0 %v220
          %v228 = vpop.xlane.xlu0 %227
          %v229 = vrot.slane %v228, 4
          %v230 = vmax.f32 %v228, %v229
          %v231 = vrot.slane %v230, 2
          %v232 = vmax.f32 %v230, %v231
          %v233 = vrot.slane %v232, 1
          %v234 = vmax.f32 %v232, %v233
          %s235 = vtos %v234
          %236 = vmax.xlane.f32.xlu0 %v222
          %v237 = vpop.xlane.xlu0 %236
          %v238 = vrot.slane %v237, 4
          %v239 = vmax.f32 %v237, %v238
          %v240 = vrot.slane %v239, 2
          %v241 = vmax.f32 %v239, %v240
          %v242 = vrot.slane %v241, 1
          %v243 = vmax.f32 %v241, %v242
          %s244 = vtos %v243
          %s245 = smax.f32 %s235, %s244
          %246 = vmax.xlane.f32.xlu0 %v224
          %v247 = vpop.xlane.xlu0 %246
          %v248 = vrot.slane %v247, 4
          %v249 = vmax.f32 %v247, %v248
          %v250 = vrot.slane %v249, 2
          %v251 = vmax.f32 %v249, %v250
          %v252 = vrot.slane %v251, 1
          %v253 = vmax.f32 %v251, %v252
          %s254 = vtos %v253
          %s255 = smax.f32 %s245, %s254
          %256 = vmax.xlane.f32.xlu0 %v226
          %v257 = vpop.xlane.xlu0 %256
          %v258 = vrot.slane %v257, 4
          %v259 = vmax.f32 %v257, %v258
          %v260 = vrot.slane %v259, 2
          %v261 = vmax.f32 %v259, %v260
          %v262 = vrot.slane %v261, 1
          %v263 = vmax.f32 %v261, %v262
          %s264 = vtos %v263
          %s265 = smax.f32 %s255, %s264
          %v266 = vstv %s265
          %vm267 = vcmp.eq.f32.partialorder %v220, %v266
          %v268 = vsel %vm267, 1.0, 0.0
          %269 = vadd.xlane.f32.xlu0 %v268
          %v270 = vpop.xlane.xlu0 %269
          %v271 = vrot.slane %v270, 4
          %v272 = vadd.f32 %v270, %v271
          %v273 = vrot.slane %v272, 2
          %v274 = vadd.f32 %v272, %v273
          %v275 = vrot.slane %v274, 1
          %v276 = vadd.f32 %v274, %v275
          %s277 = vtos %v276
          %s278 = sadd.f32 %s277, 0.0
          %vm279 = vcmp.eq.f32.partialorder %v222, %v266
          %v280 = vsel %vm279, 1.0, 0.0
          %281 = vadd.xlane.f32.xlu0 %v280
          %v282 = vpop.xlane.xlu0 %281
          %v283 = vrot.slane %v282, 4
          %v284 = vadd.f32 %v282, %v283
          %v285 = vrot.slane %v284, 2
          %v286 = vadd.f32 %v284, %v285
          %v287 = vrot.slane %v286, 1
          %v288 = vadd.f32 %v286, %v287
          %s289 = vtos %v288
          %s290 = sadd.f32 %s278, %s289
          %vm291 = vcmp.eq.f32.partialorder %v224, %v266
          %v292 = vsel %vm291, 1.0, 0.0
          %293 = vadd.xlane.f32.xlu0 %v292
          %v294 = vpop.xlane.xlu0 %293
          %v295 = vrot.slane %v294, 4
          %v296 = vadd.f32 %v294, %v295
          %v297 = vrot.slane %v296, 2
          %v298 = vadd.f32 %v296, %v297
          %v299 = vrot.slane %v298, 1
          %v300 = vadd.f32 %v298, %v299
          %s301 = vtos %v300
          %s302 = sadd.f32 %s290, %s301
          %vm303 = vcmp.eq.f32.partialorder %v226, %v266
          %v304 = vsel %vm303, 1.0, 0.0
          %305 = vadd.xlane.f32.xlu0 %v304
          %v306 = vpop.xlane.xlu0 %305
          %v307 = vrot.slane %v306, 4
          %v308 = vadd.f32 %v306, %v307
          %v309 = vrot.slane %v308, 2
          %v310 = vadd.f32 %v308, %v309
          %v311 = vrot.slane %v310, 1
          %v312 = vadd.f32 %v310, %v311
          %s313 = vtos %v312
          %s314 = sadd.f32 %s302, %s313
          %s315 = smin.f32 %s314, 4.0
          %s316 = smul.f32 %s315, %s265
          %s317 = sadd.f32 %s316, 0.0
          %s318 = ssub.f32 4.0, %s315
          %vm319 = vcmp.lt.f32.partialorder %v220, %v266
          %v320 = vsel %vm319, %v220, -1.0
          %vm321 = vcmp.lt.f32.partialorder %v222, %v266
          %v322 = vsel %vm321, %v222, -1.0
          %vm323 = vcmp.lt.f32.partialorder %v224, %v266
          %v324 = vsel %vm323, %v224, -1.0
          %vm325 = vcmp.lt.f32.partialorder %v226, %v266
          %v326 = vsel %vm325, %v226, -1.0
          %327 = vmax.xlane.f32.xlu0 %v320
          %v328 = vpop.xlane.xlu0 %327
          %v329 = vrot.slane %v328, 4
          %v330 = vmax.f32 %v328, %v329
          %v331 = vrot.slane %v330, 2
          %v332 = vmax.f32 %v330, %v331
          %v333 = vrot.slane %v332, 1
          %v334 = vmax.f32 %v332, %v333
          %s335 = vtos %v334
          %336 = vmax.xlane.f32.xlu0 %v322
          %v337 = vpop.xlane.xlu0 %336
          %v338 = vrot.slane %v337, 4
          %v339 = vmax.f32 %v337, %v338
          %v340 = vrot.slane %v339, 2
          %v341 = vmax.f32 %v339, %v340
          %v342 = vrot.slane %v341, 1
          %v343 = vmax.f32 %v341, %v342
          %s344 = vtos %v343
          %s345 = smax.f32 %s335, %s344
          %346 = vmax.xlane.f32.xlu0 %v324
          %v347 = vpop.xlane.xlu0 %346
          %v348 = vrot.slane %v347, 4
          %v349 = vmax.f32 %v347, %v348
          %v350 = vrot.slane %v349, 2
          %v351 = vmax.f32 %v349, %v350
          %v352 = vrot.slane %v351, 1
          %v353 = vmax.f32 %v351, %v352
          %s354 = vtos %v353
          %s355 = smax.f32 %s345, %s354
          %356 = vmax.xlane.f32.xlu0 %v326
          %v357 = vpop.xlane.xlu0 %356
          %v358 = vrot.slane %v357, 4
          %v359 = vmax.f32 %v357, %v358
          %v360 = vrot.slane %v359, 2
          %v361 = vmax.f32 %v359, %v360
          %v362 = vrot.slane %v361, 1
          %v363 = vmax.f32 %v361, %v362
          %s364 = vtos %v363
          %s365 = smax.f32 %s355, %s364
          %v366 = vstv %s365
          %vm367 = vcmp.eq.f32.partialorder %v220, %v366
          %v368 = vsel %vm367, 1.0, 0.0
          %369 = vadd.xlane.f32.xlu0 %v368
          %v370 = vpop.xlane.xlu0 %369
          %v371 = vrot.slane %v370, 4
          %v372 = vadd.f32 %v370, %v371
          %v373 = vrot.slane %v372, 2
          %v374 = vadd.f32 %v372, %v373
          %v375 = vrot.slane %v374, 1
          %v376 = vadd.f32 %v374, %v375
          %s377 = vtos %v376
          %s378 = sadd.f32 %s377, 0.0
          %vm379 = vcmp.eq.f32.partialorder %v222, %v366
          %v380 = vsel %vm379, 1.0, 0.0
          %381 = vadd.xlane.f32.xlu0 %v380
          %v382 = vpop.xlane.xlu0 %381
          %v383 = vrot.slane %v382, 4
          %v384 = vadd.f32 %v382, %v383
          %v385 = vrot.slane %v384, 2
          %v386 = vadd.f32 %v384, %v385
          %v387 = vrot.slane %v386, 1
          %v388 = vadd.f32 %v386, %v387
          %s389 = vtos %v388
          %s390 = sadd.f32 %s378, %s389
          %vm391 = vcmp.eq.f32.partialorder %v224, %v366
          %v392 = vsel %vm391, 1.0, 0.0
          %393 = vadd.xlane.f32.xlu0 %v392
          %v394 = vpop.xlane.xlu0 %393
          %v395 = vrot.slane %v394, 4
          %v396 = vadd.f32 %v394, %v395
          %v397 = vrot.slane %v396, 2
          %v398 = vadd.f32 %v396, %v397
          %v399 = vrot.slane %v398, 1
          %v400 = vadd.f32 %v398, %v399
          %s401 = vtos %v400
          %s402 = sadd.f32 %s390, %s401
          %vm403 = vcmp.eq.f32.partialorder %v226, %v366
          %v404 = vsel %vm403, 1.0, 0.0
          %405 = vadd.xlane.f32.xlu0 %v404
          %v406 = vpop.xlane.xlu0 %405
          %v407 = vrot.slane %v406, 4
          %v408 = vadd.f32 %v406, %v407
          %v409 = vrot.slane %v408, 2
          %v410 = vadd.f32 %v408, %v409
          %v411 = vrot.slane %v410, 1
          %v412 = vadd.f32 %v410, %v411
          %s413 = vtos %v412
          %s414 = sadd.f32 %s402, %s413
          %s415 = smin.f32 %s414, %s318
          %s416 = smul.f32 %s415, %s365
          %s417 = sadd.f32 %s317, %s416
          %s418 = ssub.f32 %s318, %s415
          %vm419 = vcmp.lt.f32.partialorder %v220, %v366
          %v420 = vsel %vm419, %v220, -1.0
          %vm421 = vcmp.lt.f32.partialorder %v222, %v366
          %v422 = vsel %vm421, %v222, -1.0
          %vm423 = vcmp.lt.f32.partialorder %v224, %v366
          %v424 = vsel %vm423, %v224, -1.0
          %vm425 = vcmp.lt.f32.partialorder %v226, %v366
          %v426 = vsel %vm425, %v226, -1.0
          %427 = vmax.xlane.f32.xlu0 %v420
          %v428 = vpop.xlane.xlu0 %427
          %v429 = vrot.slane %v428, 4
          %v430 = vmax.f32 %v428, %v429
          %v431 = vrot.slane %v430, 2
          %v432 = vmax.f32 %v430, %v431
          %v433 = vrot.slane %v432, 1
          %v434 = vmax.f32 %v432, %v433
          %s435 = vtos %v434
          %436 = vmax.xlane.f32.xlu0 %v422
          %v437 = vpop.xlane.xlu0 %436
          %v438 = vrot.slane %v437, 4
          %v439 = vmax.f32 %v437, %v438
          %v440 = vrot.slane %v439, 2
          %v441 = vmax.f32 %v439, %v440
          %v442 = vrot.slane %v441, 1
          %v443 = vmax.f32 %v441, %v442
          %s444 = vtos %v443
          %s445 = smax.f32 %s435, %s444
          %446 = vmax.xlane.f32.xlu0 %v424
          %v447 = vpop.xlane.xlu0 %446
          %v448 = vrot.slane %v447, 4
          %v449 = vmax.f32 %v447, %v448
          %v450 = vrot.slane %v449, 2
          %v451 = vmax.f32 %v449, %v450
          %v452 = vrot.slane %v451, 1
          %v453 = vmax.f32 %v451, %v452
          %s454 = vtos %v453
          %s455 = smax.f32 %s445, %s454
          %456 = vmax.xlane.f32.xlu0 %v426
          %v457 = vpop.xlane.xlu0 %456
          %v458 = vrot.slane %v457, 4
          %v459 = vmax.f32 %v457, %v458
          %v460 = vrot.slane %v459, 2
          %v461 = vmax.f32 %v459, %v460
          %v462 = vrot.slane %v461, 1
          %v463 = vmax.f32 %v461, %v462
          %s464 = vtos %v463
          %s465 = smax.f32 %s455, %s464
          %v466 = vstv %s465
          %vm467 = vcmp.eq.f32.partialorder %v220, %v466
          %v468 = vsel %vm467, 1.0, 0.0
          %469 = vadd.xlane.f32.xlu0 %v468
          %v470 = vpop.xlane.xlu0 %469
          %v471 = vrot.slane %v470, 4
          %v472 = vadd.f32 %v470, %v471
          %v473 = vrot.slane %v472, 2
          %v474 = vadd.f32 %v472, %v473
          %v475 = vrot.slane %v474, 1
          %v476 = vadd.f32 %v474, %v475
          %s477 = vtos %v476
          %s478 = sadd.f32 %s477, 0.0
          %vm479 = vcmp.eq.f32.partialorder %v222, %v466
          %v480 = vsel %vm479, 1.0, 0.0
          %481 = vadd.xlane.f32.xlu0 %v480
          %v482 = vpop.xlane.xlu0 %481
          %v483 = vrot.slane %v482, 4
          %v484 = vadd.f32 %v482, %v483
          %v485 = vrot.slane %v484, 2
          %v486 = vadd.f32 %v484, %v485
          %v487 = vrot.slane %v486, 1
          %v488 = vadd.f32 %v486, %v487
          %s489 = vtos %v488
          %s490 = sadd.f32 %s478, %s489
          %vm491 = vcmp.eq.f32.partialorder %v224, %v466
          %v492 = vsel %vm491, 1.0, 0.0
          %493 = vadd.xlane.f32.xlu0 %v492
          %v494 = vpop.xlane.xlu0 %493
          %v495 = vrot.slane %v494, 4
          %v496 = vadd.f32 %v494, %v495
          %v497 = vrot.slane %v496, 2
          %v498 = vadd.f32 %v496, %v497
          %v499 = vrot.slane %v498, 1
          %v500 = vadd.f32 %v498, %v499
          %s501 = vtos %v500
          %s502 = sadd.f32 %s490, %s501
          %vm503 = vcmp.eq.f32.partialorder %v226, %v466
          %v504 = vsel %vm503, 1.0, 0.0
          %505 = vadd.xlane.f32.xlu0 %v504
          %v506 = vpop.xlane.xlu0 %505
          %v507 = vrot.slane %v506, 4
          %v508 = vadd.f32 %v506, %v507
          %v509 = vrot.slane %v508, 2
          %v510 = vadd.f32 %v508, %v509
          %v511 = vrot.slane %v510, 1
          %v512 = vadd.f32 %v510, %v511
          %s513 = vtos %v512
          %s514 = sadd.f32 %s502, %s513
          %s515 = smin.f32 %s514, %s418
          %s516 = smul.f32 %s515, %s465
          %s517 = sadd.f32 %s417, %s516
          %s518 = ssub.f32 %s418, %s515
          %vm519 = vcmp.lt.f32.partialorder %v220, %v466
          %v520 = vsel %vm519, %v220, -1.0
          %vm521 = vcmp.lt.f32.partialorder %v222, %v466
          %v522 = vsel %vm521, %v222, -1.0
          %vm523 = vcmp.lt.f32.partialorder %v224, %v466
          %v524 = vsel %vm523, %v224, -1.0
          %vm525 = vcmp.lt.f32.partialorder %v226, %v466
          %v526 = vsel %vm525, %v226, -1.0
          %527 = vmax.xlane.f32.xlu0 %v520
          %v528 = vpop.xlane.xlu0 %527
          %v529 = vrot.slane %v528, 4
          %v530 = vmax.f32 %v528, %v529
          %v531 = vrot.slane %v530, 2
          %v532 = vmax.f32 %v530, %v531
          %v533 = vrot.slane %v532, 1
          %v534 = vmax.f32 %v532, %v533
          %s535 = vtos %v534
          %536 = vmax.xlane.f32.xlu0 %v522
          %v537 = vpop.xlane.xlu0 %536
          %v538 = vrot.slane %v537, 4
          %v539 = vmax.f32 %v537, %v538
          %v540 = vrot.slane %v539, 2
          %v541 = vmax.f32 %v539, %v540
          %v542 = vrot.slane %v541, 1
          %v543 = vmax.f32 %v541, %v542
          %s544 = vtos %v543
          %s545 = smax.f32 %s535, %s544
          %546 = vmax.xlane.f32.xlu0 %v524
          %v547 = vpop.xlane.xlu0 %546
          %v548 = vrot.slane %v547, 4
          %v549 = vmax.f32 %v547, %v548
          %v550 = vrot.slane %v549, 2
          %v551 = vmax.f32 %v549, %v550
          %v552 = vrot.slane %v551, 1
          %v553 = vmax.f32 %v551, %v552
          %s554 = vtos %v553
          %s555 = smax.f32 %s545, %s554
          %556 = vmax.xlane.f32.xlu0 %v526
          %v557 = vpop.xlane.xlu0 %556
          %v558 = vrot.slane %v557, 4
          %v559 = vmax.f32 %v557, %v558
          %v560 = vrot.slane %v559, 2
          %v561 = vmax.f32 %v559, %v560
          %v562 = vrot.slane %v561, 1
          %v563 = vmax.f32 %v561, %v562
          %s564 = vtos %v563
          %s565 = smax.f32 %s555, %s564
          %v566 = vstv %s565
          %vm567 = vcmp.eq.f32.partialorder %v220, %v566
          %v568 = vsel %vm567, 1.0, 0.0
          %569 = vadd.xlane.f32.xlu0 %v568
          %v570 = vpop.xlane.xlu0 %569
          %v571 = vrot.slane %v570, 4
          %v572 = vadd.f32 %v570, %v571
          %v573 = vrot.slane %v572, 2
          %v574 = vadd.f32 %v572, %v573
          %v575 = vrot.slane %v574, 1
          %v576 = vadd.f32 %v574, %v575
          %s577 = vtos %v576
          %s578 = sadd.f32 %s577, 0.0
          %vm579 = vcmp.eq.f32.partialorder %v222, %v566
          %v580 = vsel %vm579, 1.0, 0.0
          %581 = vadd.xlane.f32.xlu0 %v580
          %v582 = vpop.xlane.xlu0 %581
          %v583 = vrot.slane %v582, 4
          %v584 = vadd.f32 %v582, %v583
          %v585 = vrot.slane %v584, 2
          %v586 = vadd.f32 %v584, %v585
          %v587 = vrot.slane %v586, 1
          %v588 = vadd.f32 %v586, %v587
          %s589 = vtos %v588
          %s590 = sadd.f32 %s578, %s589
          %vm591 = vcmp.eq.f32.partialorder %v224, %v566
          %v592 = vsel %vm591, 1.0, 0.0
          %593 = vadd.xlane.f32.xlu0 %v592
          %v594 = vpop.xlane.xlu0 %593
          %v595 = vrot.slane %v594, 4
          %v596 = vadd.f32 %v594, %v595
          %v597 = vrot.slane %v596, 2
          %v598 = vadd.f32 %v596, %v597
          %v599 = vrot.slane %v598, 1
          %v600 = vadd.f32 %v598, %v599
          %s601 = vtos %v600
          %s602 = sadd.f32 %s590, %s601
          %vm603 = vcmp.eq.f32.partialorder %v226, %v566
          %v604 = vsel %vm603, 1.0, 0.0
          %605 = vadd.xlane.f32.xlu0 %v604
          %v606 = vpop.xlane.xlu0 %605
          %v607 = vrot.slane %v606, 4
          %v608 = vadd.f32 %v606, %v607
          %v609 = vrot.slane %v608, 2
          %v610 = vadd.f32 %v608, %v609
          %v611 = vrot.slane %v610, 1
          %v612 = vadd.f32 %v610, %v611
          %s613 = vtos %v612
          %s614 = sadd.f32 %s602, %s613
          %s615 = smin.f32 %s614, %s518
          %s616 = smul.f32 %s615, %s565
          %s617 = sadd.f32 %s517, %s616
          %v618 = vstv %s617
          %vm619 = vcmask 0
          %620 = vst.msk [vmem:[%s211] sm:$0x1] %vm619, %v618
        $region40: #{tpu_custom_call.1} parent=27 // pred_fallthru
          _
        %p621 = scmp.lt.s32.totalorder %s23, 1
        %s622 = scalar_select %p621, %s23, 1
        %s623 = scalar_lea.vmem %s2, %s622
        // Predicated region
        $region41: #{tpu_custom_call.1} parent=27 // pred_check
          %p624 = pneg %p105
        $region42: #{tpu_custom_call.1} parent=27 // pred_check_branch
          %626 = sbr.rel (%p624) target = $region44
        $region43: #{tpu_custom_call.1} parent=27 // pred_region
          _
        $region44: #{tpu_custom_call.1} parent=27 // pred_fallthru
          _
      $region28: #{tpu_custom_call.1} parent=5 // pred_fallthru
        _
      %p627 = scmp.le.s32.totalorder 2, %s14
      // Predicated region
      $region45: #{tpu_custom_call.1} parent=5 // pred_check
        %p628 = pneg %p627
      $region46: #{tpu_custom_call.1} parent=5 // pred_check_branch
        %630 = sbr.rel (%p628) target = $region48
      $region47: #{tpu_custom_call.1} parent=5 // pred_region
        %s631 = ssub.s32 %s14, 2
        // Predicated region
        $region49: #{tpu_custom_call.1} parent=47 // pred_check
          %p632 = pneg %p111
        $region50: #{tpu_custom_call.1} parent=47 // pred_check_branch
          %634 = sbr.rel (%p632) target = $region52
        $region51: #{tpu_custom_call.1} parent=47 // pred_region
          %p635 = scmp.lt.s32.totalorder %s25, 1
          %s636 = scalar_select %p635, %s25, 1
          %s637 = scalar_lea.vmem %s2, %s636
        $region52: #{tpu_custom_call.1} parent=47 // pred_fallthru
          _
      $region48: #{tpu_custom_call.1} parent=5 // pred_fallthru
        _
    $region6: #{tpu_custom_call.1} parent=1 // loop_footer
      %s18 = sadd.s32 1, %s14
    $region7: #{tpu_custom_call.1} parent=1 // loop_footer_branch
      %13 = sbr.rel target = $region3
    $region8: #{tpu_custom_call.1} parent=1 // loop_exit
      _
    %638 = vsyncpa [#allocation4], 1
    %s639 = scalar_lea.sflag [#allocation4], 1
    %640 = vsyncpa %s639, 1
    %641 = vsyncpa [#allocation6], 1
    %s642 = scalar_lea.sflag [#allocation6], 1
    %643 = vsyncpa %s642, 1

</llo_original>
